<compile_context>
chip_gen: v7x
topology: tpu7x:2x2x1
jax: 0.10.0
libtpu: 0.0.40
codegen_flags: <defaults>
</compile_context>

<pallas_src>
import jax
import jax.numpy as jnp
from jax.experimental import pallas as pl
from jax.experimental.pallas import tpu as pltpu


_LANES = 128            # lane width of a vreg / last-dim tiling unit
assert _LANES % 4 == 0, "lane-parity divisor trick requires _LANES % 4 == 0"

_ROW_ALIGN = 32         # covers sublane packing for f32(8) / bf16(16) / int8(32)
_MAX_TILE_ROWS = 4096   # 4096 * 128 * 4 B = 2 MiB per f32 VMEM buffer
_PALLAS_MIN_ELEMS = 64 * 1024   # below this, plain fused XLA is strictly faster

# dtypes the kernel loads natively (cast to f32 happens in-kernel); anything
# else is cast to f32 on the host side first.
_KERNEL_NATIVE_DTYPES = (
    jnp.dtype(jnp.float32),
    jnp.dtype(jnp.bfloat16),
    jnp.dtype(jnp.int32),
)


def _round_up(x: int, m: int) -> int:
    return -(-x // m) * m


def _make_normalize_kernel(img_w: float, img_h: float):
    """Kernel closure over the static image size (no scale array input)."""

    def kernel(slab_ref, out_ref):
        # slab_ref: (tile_rows, 128) tile in the source dtype.
        # out_ref:  (tile_rows, 128) f32 tile.
        #
        # Flattened element index is r*128 + l; since 128 % 4 == 0 and the
        # (N, 4) flatten is row-major, the xyxy component index is l % 4, so
        # even lanes are x-coords (divide by w) and odd lanes are y-coords
        # (divide by h). Divisor is built from a single (1,128) lane iota
        # (one vreg) and broadcast over sublanes by the divide.
        lane = jax.lax.broadcasted_iota(jnp.int32, (1, _LANES), dimension=1)
        divisor = jnp.where((lane & 1) == 0,
                            jnp.float32(img_w), jnp.float32(img_h))
        x = slab_ref[...].astype(jnp.float32)
        out_ref[...] = (x / divisor).astype(out_ref.dtype)

    return kernel


def convert_bounding_boxes_to_relative_form(image, boxes, bbs_in_fmt="xyxy",
                                            force_pallas=False):
    """JAX/Pallas equivalent of ConvertBoundingBoxesToRelativeForm.forward.

    image: (..., H, W) array (any dtype) -- e.g. NCHW layout.
    boxes: (N, 4) array of 'xyxy' absolute-pixel bounding boxes.
    Returns (image, normalized_boxes); normalized_boxes is float32 (N, 4)
    (f64 inputs, unsupported on TPU, would be downcast).
    """
    if bbs_in_fmt != "xyxy":
        # TODO(synk): box_convert for non-'xyxy' formats not implemented.
        raise NotImplementedError("only 'xyxy' input format is supported")

    *_, img_h, img_w = image.shape
    n = boxes.shape[0]
    total = n * 4
    divisor_vec = jnp.asarray([img_w, img_h, img_w, img_h], dtype=jnp.float32)

    # Empty-boxes guard (rows == 0 would otherwise break the tiling math).
    if total == 0:
        return image, boxes.astype(jnp.float32) / divisor_vec

    # Small-N fast path: one fused XLA divide beats pallas dispatch + plumbing.
    if total < _PALLAS_MIN_ELEMS and not force_pallas:
        return image, boxes.astype(jnp.float32) / divisor_vec

    # --- Pallas streaming path -------------------------------------------
    src = boxes if boxes.dtype in _KERNEL_NATIVE_DTYPES else boxes.astype(jnp.float32)

    rows = -(-total // _LANES)                 # cdiv(total, 128)
    rows_al = _round_up(rows, _ROW_ALIGN)      # minimal alignment padding

    num_tiles = max(1, -(-rows_al // _MAX_TILE_ROWS))
    # v7x: once there is enough work, force >= 2 parallel grid steps so both
    # TensorCores (and both HBM paths) participate. No-op cost on v5e/v6e.
    if num_tiles == 1 and rows_al >= 2 * _ROW_ALIGN:
        num_tiles = 2
    tile_rows = _round_up(-(-rows_al // num_tiles), _ROW_ALIGN)
    padded_rows = tile_rows * num_tiles
    padded_total = padded_rows * _LANES

    flat = src.reshape(-1)
    if padded_total > total:
        # Minimal pad (at most ~num_tiles*_ROW_ALIGN rows); zeros divide to
        # zeros so no NaNs. Skipped entirely when total already aligns.
        flat = jnp.pad(flat, (0, padded_total - total))
    slab = flat.reshape(padded_rows, _LANES)

    kernel = _make_normalize_kernel(float(img_w), float(img_h))

    out_slab = pl.pallas_call(
        kernel,
        out_shape=jax.ShapeDtypeStruct((padded_rows, _LANES), jnp.float32),
        grid=(num_tiles,),
        in_specs=[pl.BlockSpec((tile_rows, _LANES), lambda i: (i, 0))],
        out_specs=pl.BlockSpec((tile_rows, _LANES), lambda i: (i, 0)),
        compiler_params=pltpu.CompilerParams(
            # megacore-shard on v7x; no-op on v5e/v6e
            dimension_semantics=("parallel",),
            # keep headroom for in+out double buffering even on v5e's 16 MiB
            # scoped-VMEM default
            vmem_limit_bytes=32 * 1024 * 1024,
        ),
    )(slab)

    if padded_total > total:
        out_boxes = out_slab.reshape(-1)[:total].reshape(n, 4)
    else:
        out_boxes = out_slab.reshape(n, 4)
    return image, out_boxes


if __name__ == "__main__":
    key = jax.random.PRNGKey(0)
    k_img, k_box = jax.random.split(key)

    B, C, H, W = 2, 4, 16, 16
    N = 8  # number of bounding boxes

    image = jax.random.normal(k_img, (B, C, H, W), dtype=jnp.float32)

    # Deterministic boxes in absolute pixel coords (x1 < x2, y1 < y2).
    xy1 = jax.random.uniform(k_box, (N, 2), minval=0.0, maxval=8.0)
    wh = jax.random.uniform(jax.random.PRNGKey(1), (N, 2), minval=1.0, maxval=7.0)
    boxes = jnp.concatenate([xy1, xy1 + wh], axis=-1)  # (N, 4) xyxy

    divisor = jnp.asarray([W, H, W, H], dtype=jnp.float32)

    # 1) Exercise the Pallas kernel (small N, single-tile path).
    out_image, out_boxes = convert_bounding_boxes_to_relative_form(
        image, boxes, force_pallas=True)
    jax.block_until_ready(out_boxes)
    jax.block_until_ready(out_image)
    ref = boxes / divisor
    assert out_image.shape == image.shape
    assert out_boxes.shape == (N, 4)
    assert jnp.allclose(out_boxes, ref, rtol=1e-6, atol=1e-6), "pallas small-N mismatch"
    assert jnp.array_equal(out_image, image), "image must pass through unchanged"

    # 2) Default call at small N takes the fused-XLA fast path.
    _, out_fast = convert_bounding_boxes_to_relative_form(image, boxes)
    jax.block_until_ready(out_fast)
    assert jnp.allclose(out_fast, ref, rtol=1e-6, atol=1e-6), "fast-path mismatch"

    # 3) Larger N exercises the multi-tile (parallel grid) + padded/sliced path.
    N2 = 3000
    xy1b = jax.random.uniform(jax.random.PRNGKey(2), (N2, 2), minval=0.0, maxval=8.0)
    whb = jax.random.uniform(jax.random.PRNGKey(3), (N2, 2), minval=1.0, maxval=7.0)
    boxes2 = jnp.concatenate([xy1b, xy1b + whb], axis=-1)
    _, out_boxes2 = convert_bounding_boxes_to_relative_form(
        image, boxes2, force_pallas=True)
    jax.block_until_ready(out_boxes2)
    ref2 = boxes2 / divisor
    assert out_boxes2.shape == (N2, 4)
    assert jnp.allclose(out_boxes2, ref2, rtol=1e-6, atol=1e-6), "pallas multi-tile mismatch"

    # 4) Empty-boxes guard.
    _, out_empty = convert_bounding_boxes_to_relative_form(
        image, jnp.zeros((0, 4), jnp.float32))
    assert out_empty.shape == (0, 4)

    print("KERNEL_OK")
</pallas_src>

<mosaic_0001>
module attributes {stable_mosaic.version = 11 : i64} {
  func.func @kernel(%arg0: i32, %arg1: memref<32x128xf32, #tpu.memory_space<vmem>>, %arg2: memref<32x128xf32, #tpu.memory_space<vmem>>) attributes {dimension_semantics = [#tpu.dimension_semantics<parallel>], iteration_bounds = array<i64: 1>, scalar_prefetch = 0 : i64, scratch_operands = 0 : i64, tpu.core_type = #tpu.core_type<tc>, window_params = [{transform_indices = @transform_0, window_bounds = array<i64: 32, 128>}, {transform_indices = @transform_1, window_bounds = array<i64: 32, 128>}]} {
    %0 = tpu.iota {dimensions = array<i32: 1>} : vector<1x128xi32>
    %c1_i32 = arith.constant 1 : i32
    %1 = vector.broadcast %c1_i32 : i32 to vector<1x128xi32>
    %2 = arith.andi %0, %1 : vector<1x128xi32>
    %c0_i32 = arith.constant 0 : i32
    %3 = vector.broadcast %c0_i32 : i32 to vector<1x128xi32>
    %4 = arith.cmpi eq, %2, %3 : vector<1x128xi32>
    %cst = arith.constant 1.600000e+01 : f32
    %cst_0 = arith.constant 1.600000e+01 : f32
    %5 = vector.broadcast %cst : f32 to vector<1x128xf32>
    %6 = vector.broadcast %cst_0 : f32 to vector<1x128xf32>
    %7 = arith.select %4, %5, %6 : vector<1x128xi1>, vector<1x128xf32>
    %c0 = arith.constant 0 : index
    %c0_1 = arith.constant 0 : index
    %8 = vector.load %arg1[%c0, %c0_1] : memref<32x128xf32, #tpu.memory_space<vmem>>, vector<32x128xf32>
    %9 = vector.broadcast %7 : vector<1x128xf32> to vector<32x128xf32>
    %10 = arith.divf %8, %9 : vector<32x128xf32>
    %c0_2 = arith.constant 0 : index
    %c0_3 = arith.constant 0 : index
    %11 = vector.load %arg2[%c0_2, %c0_3] : memref<32x128xf32, #tpu.memory_space<vmem>>, vector<32x128xf32>
    tpu.vector_store %arg2[%c0_2, %c0_3], %10 {strides = array<i32>} : memref<32x128xf32, #tpu.memory_space<vmem>>, vector<32x128xf32>,
    return
  }
  func.func @transform_0(%arg0: i32) -> (i32, i32) {
    %c0_i32 = arith.constant 0 : i32
    %c0_i32_0 = arith.constant 0 : i32
    return %arg0, %c0_i32 : i32, i32
  }
  func.func @transform_1(%arg0: i32) -> (i32, i32) {
    %c0_i32 = arith.constant 0 : i32
    %c0_i32_0 = arith.constant 0 : i32
    return %arg0, %c0_i32 : i32, i32
  }
}

</mosaic_0001>

<llo_original>
// kernel: tpu_custom_call.1
$region0: #{tpu_custom_call.1}
  #allocation0 [shape = 'u32[]', space=smem, size = 0x4, offset = 0x4, fixed_abs, tag = 'smem constant byte address 0x4 - core index']
  #allocation1 [shape = 'u32[144,128]{1,0:T(1,128)}', space=vmem, size = 0x12000, scoped, tag = 'internal scratch']
  %s0 = inlined_call_operand.hbm [shape: f32[32,128], index: 0, kind: input, shape index: {}]
  %s1 = inlined_call_operand.hbm [shape: f32[32,128], index: 1, kind: output, shape index: {}]
  %s2 = sld [smem:[#allocation0]]
  $region18: #{tpu_custom_call.1} parent=0
    _
  %s4 = ssub.s32 1, %s2
  %s5 = scalar_select 0, %s4, %s2
  $region1: #{tpu_custom_call.1} parent=0
    #allocation2 [shape = 'u8[16384]{0}', space=vmem, size = 0x4000, scoped, tag = 'input window, operand 0, single buffered']
    #allocation3 [shape = 's32[1]{0}', space=sflag, size = 0x4, scoped, tag = 'scoped memory for tpu_custom_call.1']
    #allocation4 [shape = 's32[1]{0}', space=sflag, size = 0x4, scoped, tag = 'scoped memory for tpu_custom_call.1']
    #allocation5 [shape = 'u8[16384]{0}', space=vmem, size = 0x4000, scoped, tag = 'output window, operand 0, single buffered']
    %6 = vsyncpa [#allocation3], 0
    %7 = vsyncpa [#allocation4], 0
    // Predicated region
    $region2: #{tpu_custom_call.1} parent=1 // pred_check
      _
    $region3: #{tpu_custom_call.1} parent=1 // pred_check_branch
      %9 = sbr.rel (0) target = $region5
    $region4: #{tpu_custom_call.1} parent=1 // pred_region
      %s11 = ssub.s32 512, 512
      %12 = vsyncadd [#allocation3], %s11
      %s13 = sshll.u32 [#allocation2], 4
      %s14 = int_to_ptr.vmem [resolvable:$true] %s13
      %19 = dma.hbm_to_vmem [thread:$0]  %s0, 512, %s14, [#allocation3], 128, 128, 8
    $region5: #{tpu_custom_call.1} parent=1 // pred_fallthru
      _
    // Predicated region
    $region6: #{tpu_custom_call.1} parent=1 // pred_check
      _
    $region7: #{tpu_custom_call.1} parent=1 // pred_check_branch
      %21 = sbr.rel (0) target = $region9
    $region8: #{tpu_custom_call.1} parent=1 // pred_region
      %22 = dma.done [#allocation3], 512
    $region9: #{tpu_custom_call.1} parent=1 // pred_fallthru
      _
    %v23 = vld [vmem:[#allocation2] sm:$0xff]
    %v24 = vld [vmem:[#allocation2 + $0x8] sm:$0xff]
    %v25 = vld [vmem:[#allocation2 + $0x10] sm:$0xff]
    %v26 = vld [vmem:[#allocation2 + $0x18] sm:$0xff]
    %v27 = vrcp.pop 16.0
    %v28 = vmul.f32 %v23, %v27
    %v29 = vmul.f32 %v24, %v27
    %v30 = vmul.f32 %v25, %v27
    %v31 = vmul.f32 %v26, %v27
    %32 = vst [vmem:[#allocation5] sm:$0xff] %v28
    %33 = vst [vmem:[#allocation5 + $0x8] sm:$0xff] %v29
    %34 = vst [vmem:[#allocation5 + $0x10] sm:$0xff] %v30
    %35 = vst [vmem:[#allocation5 + $0x18] sm:$0xff] %v31
    // Predicated region
    $region10: #{tpu_custom_call.1} parent=1 // pred_check
      _
    $region11: #{tpu_custom_call.1} parent=1 // pred_check_branch
      %37 = sbr.rel (0) target = $region13
    $region12: #{tpu_custom_call.1} parent=1 // pred_region
      %s39 = ssub.s32 512, 512
      %40 = vsyncadd [#allocation4], %s39
      %s41 = sshll.u32 [#allocation5], 4
      %s42 = int_to_ptr.vmem [resolvable:$true] %s41
      %47 = dma.vmem_to_hbm [thread:$0]  %s42, 512, %s1, [#allocation4], 128, 128, 8
    $region13: #{tpu_custom_call.1} parent=1 // pred_fallthru
      _
    // Predicated region
    $region14: #{tpu_custom_call.1} parent=1 // pred_check
      _
    $region15: #{tpu_custom_call.1} parent=1 // pred_check_branch
      %49 = sbr.rel (0) target = $region17
    $region16: #{tpu_custom_call.1} parent=1 // pred_region
      %50 = dma.done [#allocation4], 512
    $region17: #{tpu_custom_call.1} parent=1 // pred_fallthru
      _
    %51 = vsyncpa [#allocation3], 1
    %52 = vsyncpa [#allocation4], 1

</llo_original>
